<compile_context>
chip_gen: v7x
topology: tpu7x:2x2x1
jax: 0.10.0
libtpu: 0.0.40
codegen_flags: <defaults>
</compile_context>

<pallas_src>
import functools

import jax
import jax.numpy as jnp
from jax import lax
from jax.experimental import pallas as pl
from jax.experimental.pallas import tpu as pltpu

HIDDEN = 128


# ---------------------------------------------------------------------------
# Kernel
# ---------------------------------------------------------------------------
def _disc_kernel(x_ref, w1_ref, b1_ref, w2_ref, b2_ref, o_ref, acc_ref, *,
                 compute_dtype):
    k = pl.program_id(1)

    @pl.when(k == 0)
    def _init():
        acc_ref[...] = jnp.zeros_like(acc_ref)

    # Layer-1 partial product on the MXU: (tile, tk) @ (tk, 128) with f32
    # accumulation.  bf16 operands halve the HBM stream (if x is stored bf16)
    # and cut MXU passes; compute_dtype=float32 keeps the exact path.
    acc_ref[...] += jnp.dot(
        x_ref[...].astype(compute_dtype),
        w1_ref[...].astype(compute_dtype),
        preferred_element_type=jnp.float32,
    )

    @pl.when(k == pl.num_programs(1) - 1)
    def _finalize():
        h = acc_ref[...] + b1_ref[...]          # (tile, 128) + (1, 128) broadcast
        h = jnp.maximum(h, 0.1 * h)             # LeakyReLU(0.1) — single VPU max
        # Layer 2 as (1,128) · (tile,128)^T on the MXU -> lane-dense (1, tile)
        # row, so the output store is a full unmasked vst.
        z = lax.dot_general(
            w2_ref[...], h,
            dimension_numbers=(((1,), (1,)), ((), ())),
            preferred_element_type=jnp.float32,
        ) + b2_ref[0]
        # Sigmoid: exp on the EUP; exact divide is cheap on a (1, tile) row.
        o_ref[...] = (1.0 / (1.0 + jnp.exp(-z))).astype(o_ref.dtype)


# ---------------------------------------------------------------------------
# Generation-aware tiling
# ---------------------------------------------------------------------------
def _round_up(v, m):
    return ((v + m - 1) // m) * m


def _chip_params():
    """Returns (vmem_budget_bytes, vmem_limit_bytes, num_tensorcores)."""
    kind = ""
    try:
        kind = jax.devices()[0].device_kind.lower()
    except Exception:  # pragma: no cover - defensive fallback
        pass
    if "v7" in kind:                                   # 64 MiB physical VMEM, 2 TC
        return 24 * 2**20, 32 * 2**20, 2
    if any(t in kind for t in ("v6", "lite", "v5e")):  # 128 MiB VMEM, 1 TC
        return 72 * 2**20, 96 * 2**20, 1
    if any(t in kind for t in ("v5p", "v5", "v4")):    # 128 MiB VMEM, 2 TC megacore
        return 72 * 2**20, 96 * 2**20, 2
    if any(t in kind for t in ("v3", "v2")):           # 16 MiB VMEM
        return 10 * 2**20, 14 * 2**20, 1
    # Unknown backend: conservative v7x-like settings (safe everywhere).
    return 24 * 2**20, 32 * 2**20, 2


def _pick_tiles(B, F, x_isz, w1_isz, budget, num_tc, max_batch_tile):
    """Pick (batch_tile, k_tile, k_steps, padded_F) under the VMEM budget."""
    third = budget // 3
    # K (feature) tile: keep the double-buffered (tk, 128) W1 block and a
    # 128-row double-buffered x block each within ~1/3 of the budget.
    tk_cap = min(third // (2 * HIDDEN * w1_isz),
                 third // (2 * 128 * x_isz))
    tk_cap = max(128, tk_cap)
    if F <= tk_cap:
        tk, f_pad = F, F                       # common case: single K step, no pad
    else:
        tk = (tk_cap // 128) * 128             # x block lane dim must be %128
        f_pad = _round_up(F, tk)               # zero-pad (exact) for ragged K
    k_steps = f_pad // tk

    # Batch tile: largest sublane-aligned tile that fits the remaining budget.
    resident = 2 * tk * HIDDEN * w1_isz + 4 * HIDDEN * 4      # W1 + (b1, w2)
    per_row = 2 * tk * x_isz + HIDDEN * 4 + 2 * 4             # x + acc + out
    max_rows = max(8, (budget - resident) // per_row)

    # 2-TC parts: keep >= ~8 grid steps (>=4 per core) when B allows so the
    # pipeline overlaps DMA with compute on both cores.  1-TC parts: no cap —
    # just grow to the VMEM/512-row maximum.
    min_steps = 8 if num_tc >= 2 else 1
    desired = min(max_rows, max_batch_tile, _round_up(pl.cdiv(B, min_steps), 8))
    desired = max(8, desired)
    if desired >= B:
        tile = B                               # single batch step; block == full dim
    else:
        tile = max(128, (desired // 128) * 128)  # lane-dense (1, tile) out needs %128
    return tile, tk, k_steps, f_pad


# ---------------------------------------------------------------------------
# Wrapper
# ---------------------------------------------------------------------------
@functools.partial(jax.jit, static_argnames=("compute_dtype", "max_batch_tile"))
def discriminator_forward(x, w1, b1, w2, b2, *, compute_dtype=jnp.bfloat16,
                          max_batch_tile=512):
    """x: (B, F) float32/bfloat16.  Returns (B, 1) float32 in [0, 1]."""
    B, F = x.shape
    compute_dtype = jnp.dtype(compute_dtype)
    budget, vmem_limit, num_tc = _chip_params()
    tile, tk, k_steps, f_pad = _pick_tiles(
        B, F, x.dtype.itemsize, w1.dtype.itemsize, budget, num_tc, max_batch_tile)

    if f_pad != F:
        # Only reached for very large F (K-tiling).  Zero-padding the feature
        # dim is exact for the matmul and keeps the kernel within VMEM.
        x = jnp.pad(x, ((0, 0), (0, f_pad - F)))
        w1 = jnp.pad(w1, ((0, f_pad - F), (0, 0)))

    kernel = functools.partial(_disc_kernel, compute_dtype=compute_dtype)
    out_row = pl.pallas_call(
        kernel,
        out_shape=jax.ShapeDtypeStruct((1, B), jnp.float32),
        grid_spec=pltpu.PrefetchScalarGridSpec(
            num_scalar_prefetch=0,
            grid=(pl.cdiv(B, tile), k_steps),
            in_specs=[
                pl.BlockSpec((tile, tk), lambda i, k: (i, k)),       # x (streamed)
                pl.BlockSpec((tk, HIDDEN), lambda i, k: (k, 0)),     # W1
                pl.BlockSpec((1, HIDDEN), lambda i, k: (0, 0)),      # b1
                pl.BlockSpec((1, HIDDEN), lambda i, k: (0, 0)),      # W2 row
                pl.BlockSpec(memory_space=pltpu.MemorySpace.SMEM),   # b2 scalar
            ],
            out_specs=pl.BlockSpec((1, tile), lambda i, k: (0, i)),  # lane-dense
            scratch_shapes=[pltpu.VMEM((tile, HIDDEN), jnp.float32)],
        ),
        compiler_params=pltpu.CompilerParams(
            dimension_semantics=("parallel", "arbitrary"),
            vmem_limit_bytes=vmem_limit,
        ),
    )(x, w1, b1, w2, b2)
    # (1, B) row-major and (B, 1) row-major share the same memory layout: free.
    return out_row.reshape(B, 1)


# ---------------------------------------------------------------------------
# Params / reference
# ---------------------------------------------------------------------------
def init_discriminator_params(key, in_features):
    """Init matching torch.nn.Linear default: U[-1/sqrt(fan_in), +1/sqrt(fan_in)]."""
    k1, k2, k3, k4 = jax.random.split(key, 4)
    bound1 = 1.0 / jnp.sqrt(jnp.float32(in_features))
    bound2 = 1.0 / jnp.sqrt(jnp.float32(HIDDEN))
    w1 = jax.random.uniform(k1, (in_features, HIDDEN), jnp.float32, -bound1, bound1)
    b1 = jax.random.uniform(k2, (1, HIDDEN), jnp.float32, -bound1, bound1)
    w2 = jax.random.uniform(k3, (1, HIDDEN), jnp.float32, -bound2, bound2)
    b2 = jax.random.uniform(k4, (1,), jnp.float32, -bound2, bound2)
    return w1, b1, w2, b2


def _reference_forward(x, w1, b1, w2, b2):
    h = x.astype(jnp.float32) @ w1 + b1
    h = jnp.maximum(h, 0.1 * h)
    z = h @ w2.T + b2
    return jax.nn.sigmoid(z)


if __name__ == "__main__":
    key = jax.random.PRNGKey(0)
    k_x, k_x2, k_x3, k_p = jax.random.split(key, 4)

    in_features = 32
    w1, b1, w2, b2 = init_discriminator_params(k_p, in_features)

    # 1) Tile-aligned batch, default bf16 compute path (loosened tolerance).
    x = jax.random.normal(k_x, (8, in_features), jnp.float32)
    out = jax.block_until_ready(discriminator_forward(x, w1, b1, w2, b2))
    ref = _reference_forward(x, w1, b1, w2, b2)
    assert out.shape == (8, 1), out.shape
    assert jnp.allclose(out, ref, atol=1e-2, rtol=1e-2), \
        float(jnp.max(jnp.abs(out - ref)))

    # 2) Exact f32 compute path, tight tolerance.
    out_f32 = jax.block_until_ready(
        discriminator_forward(x, w1, b1, w2, b2, compute_dtype=jnp.float32))
    assert jnp.allclose(out_f32, ref, atol=1e-4, rtol=1e-4), \
        float(jnp.max(jnp.abs(out_f32 - ref)))

    # 3) Ragged batch (not a multiple of the tile): exercises the no-pad,
    #    masked-tail path.
    x2 = jax.random.normal(k_x2, (10, in_features), jnp.float32)
    out2 = jax.block_until_ready(discriminator_forward(x2, w1, b1, w2, b2))
    ref2 = _reference_forward(x2, w1, b1, w2, b2)
    assert out2.shape == (10, 1), out2.shape
    assert jnp.allclose(out2, ref2, atol=1e-2, rtol=1e-2), \
        float(jnp.max(jnp.abs(out2 - ref2)))

    # 4) Larger batch with a bf16 x stream in HBM (halved input traffic) and
    #    possibly multiple batch tiles / masked lane-dense stores.
    x3 = jax.random.normal(k_x3, (300, in_features), jnp.float32).astype(jnp.bfloat16)
    out3 = jax.block_until_ready(discriminator_forward(x3, w1, b1, w2, b2))
    ref3 = _reference_forward(x3, w1, b1, w2, b2)
    assert out3.shape == (300, 1), out3.shape
    assert jnp.allclose(out3, ref3, atol=1e-2, rtol=1e-2), \
        float(jnp.max(jnp.abs(out3 - ref3)))

    print("KERNEL_OK")
</pallas_src>

<mosaic_0001>
module attributes {stable_mosaic.version = 11 : i64} {
  func.func @_disc_kernel(%arg0: i32, %arg1: i32, %arg2: memref<8x32xf32, #tpu.memory_space<vmem>>, %arg3: memref<32x128xf32, #tpu.memory_space<vmem>>, %arg4: memref<1x128xf32, #tpu.memory_space<vmem>>, %arg5: memref<1x128xf32, #tpu.memory_space<vmem>>, %arg6: memref<1xf32, #tpu.memory_space<smem>>, %arg7: memref<1x8xf32, #tpu.memory_space<vmem>>, %arg8: memref<8x128xf32, #tpu.memory_space<vmem>>) attributes {dimension_semantics = [#tpu.dimension_semantics<parallel>, #tpu.dimension_semantics<arbitrary>], iteration_bounds = array<i64: 1, 1>, scalar_prefetch = 0 : i64, scratch_operands = 1 : i64, tpu.core_type = #tpu.core_type<tc>, window_params = [{transform_indices = @transform_0, window_bounds = array<i64: 8, 32>}, {transform_indices = @transform_1, window_bounds = array<i64: 32, 128>}, {pipeline_mode = #tpu.pipeline_mode<synchronous>, transform_indices = @transform_2, window_bounds = array<i64: 1, 128>}, {pipeline_mode = #tpu.pipeline_mode<synchronous>, transform_indices = @transform_3, window_bounds = array<i64: 1, 128>}, {transform_indices = @transform_4, window_bounds = array<i64: 1>}, {transform_indices = @transform_5, window_bounds = array<i64: 1, 8>}]} {
    %c0_i32 = arith.constant 0 : i32
    %0 = arith.cmpi eq, %arg1, %c0_i32 : i32
    %1 = arith.extui %0 : i1 to i32
    %c0_i32_0 = arith.constant 0 : i32
    %2 = arith.cmpi ne, %1, %c0_i32_0 : i32
    scf.if %2 {
      %cst_10 = arith.constant 0.000000e+00 : f32
      %14 = vector.broadcast %cst_10 : f32 to vector<8x128xf32>
      %c0_11 = arith.constant 0 : index
      %c0_12 = arith.constant 0 : index
      %15 = vector.load %arg8[%c0_11, %c0_12] : memref<8x128xf32, #tpu.memory_space<vmem>>, vector<8x128xf32>
      tpu.vector_store %arg8[%c0_11, %c0_12], %14 {strides = array<i32>} : memref<8x128xf32, #tpu.memory_space<vmem>>, vector<8x128xf32>,
    } else {
    }
    %c0 = arith.constant 0 : index
    %c0_1 = arith.constant 0 : index
    %3 = vector.load %arg8[%c0, %c0_1] : memref<8x128xf32, #tpu.memory_space<vmem>>, vector<8x128xf32>
    %c0_2 = arith.constant 0 : index
    %c0_3 = arith.constant 0 : index
    %4 = vector.load %arg2[%c0_2, %c0_3] : memref<8x32xf32, #tpu.memory_space<vmem>>, vector<8x32xf32>
    %5 = arith.truncf %4 : vector<8x32xf32> to vector<8x32xbf16>
    %c0_4 = arith.constant 0 : index
    %c0_5 = arith.constant 0 : index
    %6 = vector.load %arg3[%c0_4, %c0_5] : memref<32x128xf32, #tpu.memory_space<vmem>>, vector<32x128xf32>
    %7 = arith.truncf %6 : vector<32x128xf32> to vector<32x128xbf16>
    %cst = arith.constant dense<0.000000e+00> : vector<8x128xf32>
    %8 = tpu.matmul %5, %7, %cst {dimension_numbers = #tpu.dot_dimension_numbers<[1], [0], [0], [1], [0, 0, 1, 1], [], []>} : vector<8x32xbf16>, vector<32x128xbf16>, vector<8x128xf32> -> vector<8x128xf32>
    %9 = arith.addf %3, %8 : vector<8x128xf32>
    %c0_6 = arith.constant 0 : index
    %c0_7 = arith.constant 0 : index
    %10 = vector.load %arg8[%c0_6, %c0_7] : memref<8x128xf32, #tpu.memory_space<vmem>>, vector<8x128xf32>
    tpu.vector_store %arg8[%c0_6, %c0_7], %9 {strides = array<i32>} : memref<8x128xf32, #tpu.memory_space<vmem>>, vector<8x128xf32>,
    %c0_i32_8 = arith.constant 0 : i32
    %11 = arith.cmpi eq, %arg1, %c0_i32_8 : i32
    %12 = arith.extui %11 : i1 to i32
    %c0_i32_9 = arith.constant 0 : i32
    %13 = arith.cmpi ne, %12, %c0_i32_9 : i32
    scf.if %13 {
      %c0_10 = arith.constant 0 : index
      %c0_11 = arith.constant 0 : index
      %14 = vector.load %arg8[%c0_10, %c0_11] : memref<8x128xf32, #tpu.memory_space<vmem>>, vector<8x128xf32>
      %c0_12 = arith.constant 0 : index
      %c0_13 = arith.constant 0 : index
      %15 = vector.load %arg4[%c0_12, %c0_13] : memref<1x128xf32, #tpu.memory_space<vmem>>, vector<1x128xf32>
      %16 = vector.broadcast %15 : vector<1x128xf32> to vector<8x128xf32>
      %17 = arith.addf %14, %16 : vector<8x128xf32>
      %cst_14 = arith.constant 1.000000e-01 : f32
      %18 = vector.broadcast %cst_14 : f32 to vector<8x128xf32>
      %19 = arith.mulf %18, %17 : vector<8x128xf32>
      %20 = arith.maximumf %17, %19 : vector<8x128xf32>
      %c0_15 = arith.constant 0 : index
      %c0_16 = arith.constant 0 : index
      %21 = vector.load %arg5[%c0_15, %c0_16] : memref<1x128xf32, #tpu.memory_space<vmem>>, vector<1x128xf32>
      %cst_17 = arith.constant dense<0.000000e+00> : vector<1x8xf32>
      %22 = tpu.matmul %21, %20, %cst_17 {dimension_numbers = #tpu.dot_dimension_numbers<[1], [1], [0], [0], [0, 0, 1, 0], [], []>} : vector<1x128xf32>, vector<8x128xf32>, vector<1x8xf32> -> vector<1x8xf32>
      %c0_18 = arith.constant 0 : index
      %23 = memref.load %arg6[%c0_18] : memref<1xf32, #tpu.memory_space<smem>>
      %24 = vector.broadcast %23 : f32 to vector<1x8xf32>
      %25 = arith.addf %22, %24 : vector<1x8xf32>
      %cst_19 = arith.constant 0.000000e+00 : f32
      %26 = vector.broadcast %cst_19 : f32 to vector<1x8xf32>
      %27 = arith.subf %26, %25 : vector<1x8xf32>
      %28 = math.exp %27 : vector<1x8xf32>
      %cst_20 = arith.constant 1.000000e+00 : f32
      %29 = vector.broadcast %cst_20 : f32 to vector<1x8xf32>
      %30 = arith.addf %29, %28 : vector<1x8xf32>
      %cst_21 = arith.constant 1.000000e+00 : f32
      %31 = vector.broadcast %cst_21 : f32 to vector<1x8xf32>
      %32 = arith.divf %31, %30 : vector<1x8xf32>
      %c0_22 = arith.constant 0 : index
      %c0_23 = arith.constant 0 : index
      %33 = vector.load %arg7[%c0_22, %c0_23] : memref<1x8xf32, #tpu.memory_space<vmem>>, vector<1x8xf32>
      tpu.vector_store %arg7[%c0_22, %c0_23], %32 {strides = array<i32>} : memref<1x8xf32, #tpu.memory_space<vmem>>, vector<1x8xf32>,
    } else {
    }
    return
  }
  func.func @transform_0(%arg0: i32, %arg1: i32) -> (i32, i32) {
    %c0_i32 = arith.constant 0 : i32
    return %arg0, %arg1 : i32, i32
  }
  func.func @transform_1(%arg0: i32, %arg1: i32) -> (i32, i32) {
    %c0_i32 = arith.constant 0 : i32
    %c0_i32_0 = arith.constant 0 : i32
    return %arg1, %c0_i32 : i32, i32
  }
  func.func @transform_2(%arg0: i32, %arg1: i32) -> (i32, i32) {
    %c0_i32 = arith.constant 0 : i32
    %c0_i32_0 = arith.constant 0 : i32
    %c0_i32_1 = arith.constant 0 : i32
    return %c0_i32, %c0_i32_0 : i32, i32
  }
  func.func @transform_3(%arg0: i32, %arg1: i32) -> (i32, i32) {
    %c0_i32 = arith.constant 0 : i32
    %c0_i32_0 = arith.constant 0 : i32
    %c0_i32_1 = arith.constant 0 : i32
    return %c0_i32, %c0_i32_0 : i32, i32
  }
  func.func @transform_4(%arg0: i32, %arg1: i32) -> i32 {
    %c0_i32 = arith.constant 0 : i32
    %c0_i32_0 = arith.constant 0 : i32
    return %c0_i32 : i32
  }
  func.func @transform_5(%arg0: i32, %arg1: i32) -> (i32, i32) {
    %c0_i32 = arith.constant 0 : i32
    %c0_i32_0 = arith.constant 0 : i32
    return %c0_i32, %arg0 : i32, i32
  }
}

</mosaic_0001>

<llo_original>
// kernel: discriminator_forward.1
$region0: #{discriminator_forward.1}
  #allocation0 [shape = 'u32[]', space=smem, size = 0x4, offset = 0x4, fixed_abs, tag = 'smem constant byte address 0x4 - core index']
  #allocation1 [shape = 'u32[144,128]{1,0:T(1,128)}', space=vmem, size = 0x12000, scoped, tag = 'internal scratch']
  #allocation2 [shape = 'f32[8,128]{1,0:T(8,128)}', space=vmem, size = 0x1000, scoped, tag = 'scratch operand']
  #allocation3 [shape = 'f32[1]{0:T(128)S(6)}', space=smem, size = 0x200, scoped, tag = 'scoped memory for discriminator_forward.1']
  %s0 = inlined_call_operand.hbm [shape: f32[8,32], index: 0, kind: input, shape index: {}]
  %s1 = inlined_call_operand.hbm [shape: f32[32,128], index: 1, kind: input, shape index: {}]
  %s2 = inlined_call_operand.vmem [shape: f32[1,128], index: 2, kind: input, shape index: {}]
  %s3 = inlined_call_operand.vmem [shape: f32[1,128], index: 3, kind: input, shape index: {}]
  %s4 = inlined_call_operand.<no memory space> [shape: f32[1], index: 4, kind: input, shape index: {}]
  %s5 = inlined_call_operand.hbm [shape: f32[1,8], index: 5, kind: output, shape index: {}]
  %s6 = sld [smem:[#allocation0]]
  $region46: #{discriminator_forward.1} parent=0
    _
  %s8 = ssub.s32 1, %s6
  %s9 = scalar_select 0, %s8, %s6
  %10 = sst [smem:[#allocation3]] %s4
  $region1: #{discriminator_forward.1} parent=0
    #allocation4 [shape = 'u8[4096]{0}', space=vmem, size = 0x1000, scoped, tag = 'input window, operand 0, single buffered']
    #allocation5 [shape = 's32[1]{0}', space=sflag, size = 0x4, scoped, tag = 'scoped memory for discriminator_forward.1']
    #allocation6 [shape = 's32[1]{0}', space=sflag, size = 0x4, scoped, tag = 'scoped memory for discriminator_forward.1']
    #allocation7 [shape = 'u8[16384]{0}', space=vmem, size = 0x4000, scoped, tag = 'input window, operand 1, single buffered']
    #allocation8 [shape = 's32[1]{0}', space=sflag, size = 0x4, scoped, tag = 'scoped memory for discriminator_forward.1']
    #allocation9 [shape = 'u8[512]{0}', space=vmem, size = 0x400, scoped, tag = 'output window, operand 0, single buffered']
    %11 = vsyncpa [#allocation5], 0
    %12 = vsyncpa [#allocation8], 0
    %13 = vsyncpa [#allocation6], 0
    // Predicated region
    $region2: #{discriminator_forward.1} parent=1 // pred_check
      _
    $region3: #{discriminator_forward.1} parent=1 // pred_check_branch
      %15 = sbr.rel (0) target = $region5
    $region4: #{discriminator_forward.1} parent=1 // pred_region
      %s17 = ssub.s32 128, 128
      %18 = vsyncadd [#allocation5], %s17
      %s20 = sshll.u32 [#allocation4], 4
      %s21 = int_to_ptr.vmem [resolvable:$true] %s20
      %23 = dma.hbm_to_vmem [thread:$0]  %s0, 128, %s21, [#allocation5]
    $region5: #{discriminator_forward.1} parent=1 // pred_fallthru
      _
    // Predicated region
    $region6: #{discriminator_forward.1} parent=1 // pred_check
      _
    $region7: #{discriminator_forward.1} parent=1 // pred_check_branch
      %25 = sbr.rel (0) target = $region9
    $region8: #{discriminator_forward.1} parent=1 // pred_region
      %s27 = ssub.s32 512, 512
      %28 = vsyncadd [#allocation8], %s27
      %s29 = sshll.u32 [#allocation7], 4
      %s30 = int_to_ptr.vmem [resolvable:$true] %s29
      %35 = dma.hbm_to_vmem [thread:$0]  %s1, 512, %s30, [#allocation8], 128, 128, 8
    $region9: #{discriminator_forward.1} parent=1 // pred_fallthru
      _
    // Predicated region
    $region10: #{discriminator_forward.1} parent=1 // pred_check
      _
    $region11: #{discriminator_forward.1} parent=1 // pred_check_branch
      %37 = sbr.rel (0) target = $region13
    $region12: #{discriminator_forward.1} parent=1 // pred_region
      _
    $region13: #{discriminator_forward.1} parent=1 // pred_fallthru
      _
    // Predicated region
    $region14: #{discriminator_forward.1} parent=1 // pred_check
      _
    $region15: #{discriminator_forward.1} parent=1 // pred_check_branch
      %39 = sbr.rel (0) target = $region17
    $region16: #{discriminator_forward.1} parent=1 // pred_region
      _
    $region17: #{discriminator_forward.1} parent=1 // pred_fallthru
      _
    // Predicated region
    $region18: #{discriminator_forward.1} parent=1 // pred_check
      _
    $region19: #{discriminator_forward.1} parent=1 // pred_check_branch
      %41 = sbr.rel (0) target = $region21
    $region20: #{discriminator_forward.1} parent=1 // pred_region
      _
    $region21: #{discriminator_forward.1} parent=1 // pred_fallthru
      _
    // Predicated region
    $region22: #{discriminator_forward.1} parent=1 // pred_check
      _
    $region23: #{discriminator_forward.1} parent=1 // pred_check_branch
      %43 = sbr.rel (0) target = $region25
    $region24: #{discriminator_forward.1} parent=1 // pred_region
      %44 = dma.done [#allocation5], 128
    $region25: #{discriminator_forward.1} parent=1 // pred_fallthru
      _
    // Predicated region
    $region26: #{discriminator_forward.1} parent=1 // pred_check
      _
    $region27: #{discriminator_forward.1} parent=1 // pred_check_branch
      %46 = sbr.rel (0) target = $region29
    $region28: #{discriminator_forward.1} parent=1 // pred_region
      %47 = dma.done [#allocation8], 512
    $region29: #{discriminator_forward.1} parent=1 // pred_fallthru
      _
    %p49 = scmp.eq.s32.totalorder 0, 0
    // Predicated region
    $region30: #{discriminator_forward.1} parent=1 // pred_check
      %p50 = pneg %p49
    $region31: #{discriminator_forward.1} parent=1 // pred_check_branch
      %52 = sbr.rel (%p50) target = $region33
    $region32: #{discriminator_forward.1} parent=1 // pred_region
      %53 = vst [vmem:[#allocation2] sm:$0xff] 0.0
    $region33: #{discriminator_forward.1} parent=1 // pred_fallthru
      _
    %v54 = vld [vmem:[#allocation2] sm:$0xff]
    %v55 = vld [vmem:[#allocation4] sm:$0xff]
    %v56 = vpack.c.bf16 %v55, %v55
    %v57 = vld [vmem:[#allocation7] sm:$0xff]
    %v58 = vld [vmem:[#allocation7 + $0x8] sm:$0xff]
    %v59 = vld [vmem:[#allocation7 + $0x10] sm:$0xff]
    %v60 = vld [vmem:[#allocation7 + $0x18] sm:$0xff]
    %v61 = vpack.c.bf16 %v58, %v57
    %v62 = vpack.c.bf16 %v60, %v59
    %vm63 = vcmask 261120
    %v65 = vsel %vm63, %v56, 0
    %67 = vmatprep.subr.bf16.mxu0 0
    %68 = vmatpush1.bf16.msra.mxu0 %v61
    %69 = vmatprep.subr.bf16.mxu0 0
    %70 = vmatpush1.bf16.msra.mxu0 %v62
    %71 = vmatprep.subr.bf16.mxu0 0
    %72 = vmatpush1.bf16.msra.mxu0 0
    %73 = vmatprep.subr.bf16.mxu0 0
    %74 = vmatpush1.bf16.msra.mxu0 0
    %75 = vmatprep.subr.bf16.mxu0 0
    %76 = vmatpush1.bf16.msra.mxu0 0
    %77 = vmatprep.subr.bf16.mxu0 0
    %78 = vmatpush1.bf16.msra.mxu0 0
    %79 = vmatprep.subr.bf16.mxu0 0
    %80 = vmatpush1.bf16.msra.mxu0 0
    %81 = vmatprep.subr.bf16.mxu0 0
    %82 = vmatpush1.bf16.msra.mxu0 0
    %83 = vmatprep.subr.bf16.mxu0 0
    %84 = vmatpush1.bf16.msra.mxu0 0
    %85 = vmatprep.subr.bf16.mxu0 0
    %86 = vmatpush1.bf16.msra.mxu0 0
    %87 = vmatprep.subr.bf16.mxu0 0
    %88 = vmatpush1.bf16.msra.mxu0 0
    %89 = vmatprep.subr.bf16.mxu0 0
    %90 = vmatpush1.bf16.msra.mxu0 0
    %91 = vmatprep.subr.bf16.mxu0 0
    %92 = vmatpush1.bf16.msra.mxu0 0
    %93 = vmatprep.subr.bf16.mxu0 0
    %94 = vmatpush1.bf16.msra.mxu0 0
    %95 = vmatprep.subr.bf16.mxu0 0
    %96 = vmatpush1.bf16.msra.mxu0 0
    %97 = vmatprep.subr.bf16.mxu0 0
    %98 = vmatpush1.bf16.msra.mxu0 0
    %99 = vmatprep.mubr.bf16.mxu0 0
    %100 = vmatmul.mubr.bf16.gmra.mrb[0].mxu0 %v65
    %v101 = vpop.f32.mrb[0].mxu0
    %v102 = vadd.f32 0.0, %v101
    %v103 = vpop.f32.mrb[0].mxu0
    %v104 = vpop.f32.mrb[0].mxu0
    %v105 = vpop.f32.mrb[0].mxu0
    %106 = vdwg.mxu0
    %v107 = vadd.f32 %v54, %v102
    %108 = vst [vmem:[#allocation2] sm:$0xff] %v107
    // Predicated region
    $region34: #{discriminator_forward.1} parent=1 // pred_check
      %p109 = pneg %p49
    $region35: #{discriminator_forward.1} parent=1 // pred_check_branch
      %111 = sbr.rel (%p109) target = $region37
    $region36: #{discriminator_forward.1} parent=1 // pred_region
      %v112 = vld [vmem:[#allocation2] sm:$0xff]
      %v113 = vld [vmem:[%s2] sm:$0x1]
      %v115 = vlaneseq
      %v116 = vshrl.u32 %v115, 7
      %v117 = vsub.s32 0, %v116
      %v118 = vrot.slane %v113, %v117
      %v120 = vadd.f32 %v112, %v118
      %v121 = vmul.f32 %v120, 0.1
      %v122 = vmax.f32 %v120, %v121
      %v123 = vld [vmem:[%s3] sm:$0x1]
      %s124 = sld [smem:[#allocation3]]
      %v125 = vstv %s124
      %126 = vmatprep.subr.mxu0 0.0
      %127 = vmatpush1.xpose.msra.mxu0 %v122
      %128 = vmatprep.subr.mxu0 0.0
      %129 = vmatpush1.xpose.msra.mxu0 0.0
      %130 = vmatprep.subr.mxu0 0.0
      %131 = vmatpush1.xpose.msra.mxu0 0.0
      %132 = vmatprep.subr.mxu0 0.0
      %133 = vmatpush1.xpose.msra.mxu0 0.0
      %134 = vmatprep.subr.mxu0 0.0
      %135 = vmatpush1.xpose.msra.mxu0 0.0
      %136 = vmatprep.subr.mxu0 0.0
      %137 = vmatpush1.xpose.msra.mxu0 0.0
      %138 = vmatprep.subr.mxu0 0.0
      %139 = vmatpush1.xpose.msra.mxu0 0.0
      %140 = vmatprep.subr.mxu0 0.0
      %141 = vmatpush1.xpose.msra.mxu0 0.0
      %142 = vmatprep.subr.mxu0 0.0
      %143 = vmatpush1.xpose.msra.mxu0 0.0
      %144 = vmatprep.subr.mxu0 0.0
      %145 = vmatpush1.xpose.msra.mxu0 0.0
      %146 = vmatprep.subr.mxu0 0.0
      %147 = vmatpush1.xpose.msra.mxu0 0.0
      %148 = vmatprep.subr.mxu0 0.0
      %149 = vmatpush1.xpose.msra.mxu0 0.0
      %150 = vmatprep.subr.mxu0 0.0
      %151 = vmatpush1.xpose.msra.mxu0 0.0
      %152 = vmatprep.subr.mxu0 0.0
      %153 = vmatpush1.xpose.msra.mxu0 0.0
      %154 = vmatprep.subr.mxu0 0.0
      %155 = vmatpush1.xpose.msra.mxu0 0.0
      %156 = vmatprep.subr.mxu0 0.0
      %157 = vmatpush1.xpose.msra.mxu0 0.0
      %158 = vmatprep.subr.mxu0 0.0
      %159 = vmatpush1.xpose.msra.mxu0 0.0
      %160 = vmatprep.subr.mxu0 0.0
      %161 = vmatpush1.xpose.msra.mxu0 0.0
      %162 = vmatprep.subr.mxu0 0.0
      %163 = vmatpush1.xpose.msra.mxu0 0.0
      %164 = vmatprep.subr.mxu0 0.0
      %165 = vmatpush1.xpose.msra.mxu0 0.0
      %166 = vmatprep.subr.mxu0 0.0
      %167 = vmatpush1.xpose.msra.mxu0 0.0
      %168 = vmatprep.subr.mxu0 0.0
      %169 = vmatpush1.xpose.msra.mxu0 0.0
      %170 = vmatprep.subr.mxu0 0.0
      %171 = vmatpush1.xpose.msra.mxu0 0.0
      %172 = vmatprep.subr.mxu0 0.0
      %173 = vmatpush1.xpose.msra.mxu0 0.0
      %174 = vmatprep.subr.mxu0 0.0
      %175 = vmatpush1.xpose.msra.mxu0 0.0
      %176 = vmatprep.subr.mxu0 0.0
      %177 = vmatpush1.xpose.msra.mxu0 0.0
      %178 = vmatprep.subr.mxu0 0.0
      %179 = vmatpush1.xpose.msra.mxu0 0.0
      %180 = vmatprep.subr.mxu0 0.0
      %181 = vmatpush1.xpose.msra.mxu0 0.0
      %182 = vmatprep.subr.mxu0 0.0
      %183 = vmatpush1.xpose.msra.mxu0 0.0
      %184 = vmatprep.subr.mxu0 0.0
      %185 = vmatpush1.xpose.msra.mxu0 0.0
      %186 = vmatprep.subr.mxu0 0.0
      %187 = vmatpush1.xpose.msra.mxu0 0.0
      %188 = vmatprep.subr.mxu0 0.0
      %189 = vmatpush1.xpose.msra.mxu0 0.0
      %190 = vmatprep.mubr.f32.mxu0 0.0
      %191 = vmatmul.mubr.f32.gmra.mrb[0].mxu0 %v123
      %v192 = vpop.f32.mrb[0].mxu0
      %v193 = vadd.f32 %v125, %v192
      %v194 = vpop.f32.mrb[0].mxu0
      %195 = vdwg.mxu0
      %v196 = vsub.f32 0.0, %v193
      %v197 = vmul.f32 %v196, 1.442695
      %v198 = vpow.pop %v197
      %v199 = vadd.f32 %v198, 1.0
      %v200 = vrcp.pop %v199
      %v201 = vmul.f32 1.0, %v200
      %vm202 = vcmask 57344
      %203 = vst.msk [vmem:[#allocation9] sm:$0x1] %vm202, %v201
    $region37: #{discriminator_forward.1} parent=1 // pred_fallthru
      _
    // Predicated region
    $region38: #{discriminator_forward.1} parent=1 // pred_check
      _
    $region39: #{discriminator_forward.1} parent=1 // pred_check_branch
      %205 = sbr.rel (0) target = $region41
    $region40: #{discriminator_forward.1} parent=1 // pred_region
      %s207 = ssub.s32 16, 16
      %208 = vsyncadd [#allocation6], %s207
      %s210 = sshll.u32 [#allocation9], 4
      %s211 = int_to_ptr.vmem [resolvable:$true] %s210
      %213 = dma.vmem_to_hbm [thread:$0]  %s211, 16, %s5, [#allocation6]
    $region41: #{discriminator_forward.1} parent=1 // pred_fallthru
      _
    // Predicated region
    $region42: #{discriminator_forward.1} parent=1 // pred_check
      _
    $region43: #{discriminator_forward.1} parent=1 // pred_check_branch
      %215 = sbr.rel (0) target = $region45
    $region44: #{discriminator_forward.1} parent=1 // pred_region
      %216 = dma.done [#allocation6], 16
    $region45: #{discriminator_forward.1} parent=1 // pred_fallthru
      _
    %217 = vsyncpa [#allocation5], 1
    %218 = vsyncpa [#allocation8], 1
    %219 = vsyncpa [#allocation6], 1

</llo_original>
